<compile_context>
chip_gen: v7x
topology: tpu7x:2x2x1
jax: 0.10.0
libtpu: 0.0.40
codegen_flags: <defaults>
</compile_context>

<pallas_src>
import functools

import jax
import jax.numpy as jnp
from jax import lax
from jax.experimental import pallas as pl
from jax.experimental.pallas import tpu as pltpu


def _round_up(x, m):
    return (x + m - 1) // m * m


def _choose_batch_tiling(b, cap=1024):
    """Pick (tb, b_pad): large tiles (few grid steps), but keep >= 2 even
    steps when the batch allows so v7x's two TensorCores share the work."""
    b8 = _round_up(b, 8)
    if b8 <= 8:
        return 8, 8                       # single tiny step; nothing to shard
    n_steps = max(2, -(-b8 // cap))       # ceil(b8 / cap), at least 2
    if n_steps % 2:                       # even step count shards cleanly on 2 TCs
        n_steps += 1
    tb = _round_up(-(-b8 // n_steps), 8)
    return tb, tb * n_steps


def _make_mlp_kernel(num_layers, num_actions):
    """Kernel closure: trunk (Linear+ReLU)*L, fused head, masked softmax."""

    def kernel(*refs):
        # refs = [x, (w, b) * num_layers, w_head, b_head, out]
        x_ref = refs[0]
        idx = 1

        h = x_ref[...]                     # f32 activations throughout
        for _ in range(num_layers):
            w = refs[idx][...]
            b = refs[idx + 1][...]
            idx += 2
            # Cast only the LHS at the dot (bf16 weights => bf16 MXU pass on
            # v6e/v7x); accumulate in f32; bias add / ReLU stay f32 (VPU).
            h = jnp.dot(h.astype(w.dtype), w,
                        preferred_element_type=jnp.float32) + b
            h = jnp.maximum(h, 0.0)

        w_head = refs[idx][...]
        b_head = refs[idx + 1][...]
        out_ref = refs[idx + 2]

        # Fused head: one MXU pass producing a lane-dense (TB, 128) result.
        z = jnp.dot(h.astype(w_head.dtype), w_head,
                    preferred_element_type=jnp.float32) + b_head

        lane = lax.broadcasted_iota(jnp.int32, z.shape, 1)
        pmask = (lane >= 1) & (lane <= num_actions)

        # Max-stabilized softmax over the policy columns only.
        m = jnp.max(jnp.where(pmask, z, -jnp.inf), axis=1, keepdims=True)
        e = jnp.where(pmask, jnp.exp(z - m), 0.0)
        denom = jnp.sum(e, axis=1, keepdims=True)
        # EUP approximate reciprocal + one Newton step (~f32 accuracy, free slot).
        r = pl.reciprocal(denom, approx=True)
        r = r * (2.0 - denom * r)

        # lane 0 -> value, lanes 1..A -> probabilities, rest -> 0 (e is 0 there).
        out_ref[...] = jnp.where(lane == 0, z, e * r)

    return kernel


def init_mlp_params(key, nx, ny, num_actions, num_layers, hidden_size):
    """Deterministic init mimicking torch.nn.Linear's U(-1/sqrt(fan_in), ...).

    Returns [w1, b1, ..., wL, bL, w_value, b_value, w_policy, b_policy] with
    weights as (in, out) and biases as (1, out), all float32.
    """
    input_size = nx * ny
    dims = [(input_size, hidden_size)]
    for _ in range(num_layers - 1):
        dims.append((hidden_size, hidden_size))

    params = []
    for (fan_in, fan_out) in dims:
        key, kw, kb = jax.random.split(key, 3)
        bound = 1.0 / jnp.sqrt(jnp.float32(fan_in))
        params += [
            jax.random.uniform(kw, (fan_in, fan_out), jnp.float32, -bound, bound),
            jax.random.uniform(kb, (1, fan_out), jnp.float32, -bound, bound),
        ]

    bound = 1.0 / jnp.sqrt(jnp.float32(hidden_size))
    key, kw, kb = jax.random.split(key, 3)
    params += [
        jax.random.uniform(kw, (hidden_size, 1), jnp.float32, -bound, bound),
        jax.random.uniform(kb, (1, 1), jnp.float32, -bound, bound),
    ]
    key, kw, kb = jax.random.split(key, 3)
    params += [
        jax.random.uniform(kw, (hidden_size, num_actions), jnp.float32, -bound, bound),
        jax.random.uniform(kb, (1, num_actions), jnp.float32, -bound, bound),
    ]
    return params


def fuse_head_params(params, num_layers, num_actions, param_dtype=jnp.float32):
    """One-time parameter prep (hoisted out of the forward path):
    cast trunk/head weights to `param_dtype` (bf16 on v6e/v7x, f32 on v5e)
    and fuse the value + policy heads into a lane-dense (hidden, 128k) matmul.
    Biases stay f32 (they feed VPU-side adds)."""
    trunk = []
    for l in range(num_layers):
        w, b = params[2 * l], params[2 * l + 1]
        trunk += [w.astype(param_dtype), b.astype(jnp.float32)]

    w_v, b_v, w_p, b_p = params[2 * num_layers:]
    hidden = w_v.shape[0]
    head_width = _round_up(num_actions + 1, 128)

    w_head = jnp.zeros((hidden, head_width), jnp.float32)
    w_head = w_head.at[:, 0:1].set(w_v)
    w_head = w_head.at[:, 1:1 + num_actions].set(w_p)
    b_head = jnp.zeros((1, head_width), jnp.float32)
    b_head = b_head.at[:, 0:1].set(b_v)
    b_head = b_head.at[:, 1:1 + num_actions].set(b_p)

    return trunk + [w_head.astype(param_dtype), b_head]


@functools.partial(jax.jit, static_argnames=("num_layers", "num_actions"))
def mlp_network_forward(x, fused_params, *, num_layers, num_actions):
    """Pallas-backed forward.  x: (B, nx, ny) or (B, feat) -> (value, policy).
    `fused_params` must come from fuse_head_params()."""
    assert num_actions >= 1
    b = x.shape[0]
    x_flat = x.reshape(b, -1).astype(jnp.float32)   # x.view(x.size(0), -1)
    feat = x_flat.shape[1]

    w_head = fused_params[2 * num_layers]
    hidden, head_width = w_head.shape

    # --- Batch grid: big tiles, >=2 even steps when the batch is non-trivial ---
    tb, b_pad = _choose_batch_tiling(b)
    if b_pad != b:
        x_flat = jnp.pad(x_flat, ((0, b_pad - b), (0, 0)))
    grid = (b_pad // tb,)

    in_specs = [pl.BlockSpec((tb, feat), lambda i: (i, 0))]
    for p in fused_params:
        # Grid-invariant weights/biases: resident, single pipeline buffer.
        in_specs.append(pl.BlockSpec(p.shape, lambda i: (0, 0),
                                     pipeline_mode=pl.Buffered(1)))

    # --- Explicit VMEM budget: resident weights + double-buffered I/O tiles ---
    weight_bytes = sum(int(p.size) * p.dtype.itemsize for p in fused_params)
    io_bytes = 2 * (tb * feat + tb * head_width) * 4        # x / out tiles (x2 bufs)
    act_bytes = 4 * tb * max(feat, hidden, head_width) * 4  # trunk temps + headroom
    vmem_limit = int(min(max(weight_bytes + io_bytes + act_bytes + (4 << 20),
                             16 << 20),                     # >= v5e default
                         60 << 20))                         # <= v7x physical 64 MiB

    out = pl.pallas_call(
        _make_mlp_kernel(num_layers, num_actions),
        out_shape=jax.ShapeDtypeStruct((b_pad, head_width), jnp.float32),
        grid=grid,
        in_specs=in_specs,
        out_specs=pl.BlockSpec((tb, head_width), lambda i: (i, 0)),
        compiler_params=pltpu.CompilerParams(
            dimension_semantics=("parallel",),
            vmem_limit_bytes=vmem_limit),
    )(x_flat, *fused_params)

    value = out[:b, 0:1]
    policy = out[:b, 1:1 + num_actions]
    return value, policy


def _reference_forward(x, params, num_layers):
    """Pure-JAX f32 reference for correctness checking."""
    h = x.reshape(x.shape[0], -1).astype(jnp.float32)
    idx = 0
    for _ in range(num_layers):
        h = jnp.maximum(h @ params[idx] + params[idx + 1], 0.0)
        idx += 2
    value = h @ params[idx] + params[idx + 1]
    logits = h @ params[idx + 2] + params[idx + 3]
    policy = jax.nn.softmax(logits, axis=1)
    return value, policy


if __name__ == "__main__":
    # Small, forward-consistent shapes (board nx*ny -> flattened input).
    nx, ny = 4, 4
    num_actions = 8
    num_layers = 3
    hidden_size = 32
    batch = 2

    key = jax.random.PRNGKey(0)
    k_params, k_x = jax.random.split(key)

    raw_params = init_mlp_params(k_params, nx, ny, num_actions, num_layers, hidden_size)
    x = jax.random.normal(k_x, (batch, nx, ny), jnp.float32)
    v_ref, p_ref = _reference_forward(x, raw_params, num_layers)

    # ---- f32 path: must match the torch-style reference tightly ----
    fused_f32 = fuse_head_params(raw_params, num_layers, num_actions,
                                 param_dtype=jnp.float32)
    value, policy = mlp_network_forward(
        x, fused_f32, num_layers=num_layers, num_actions=num_actions)
    jax.block_until_ready((value, policy))

    assert value.shape == (batch, 1)
    assert policy.shape == (batch, num_actions)
    assert jnp.allclose(value, v_ref, atol=1e-5, rtol=1e-5)
    assert jnp.allclose(policy, p_ref, atol=1e-5, rtol=1e-5)
    assert jnp.allclose(jnp.sum(policy, axis=1), 1.0, atol=1e-5)

    # ---- bf16-weight path (v6e/v7x MXU-native), f32 accumulation ----
    fused_bf16 = fuse_head_params(raw_params, num_layers, num_actions,
                                  param_dtype=jnp.bfloat16)
    v16, p16 = mlp_network_forward(
        x, fused_bf16, num_layers=num_layers, num_actions=num_actions)
    jax.block_until_ready((v16, p16))
    assert jnp.allclose(v16, v_ref, atol=5e-2, rtol=5e-2)
    assert jnp.allclose(p16, p_ref, atol=5e-2, rtol=5e-2)
    assert jnp.allclose(jnp.sum(p16, axis=1), 1.0, atol=1e-3)

    print("KERNEL_OK")
</pallas_src>

<mosaic_0001>
module attributes {stable_mosaic.version = 11 : i64} {
  func.func @kernel(%arg0: i32, %arg1: memref<8x16xf32, #tpu.memory_space<vmem>>, %arg2: memref<16x32xf32, #tpu.memory_space<vmem>>, %arg3: memref<1x32xf32, #tpu.memory_space<vmem>>, %arg4: memref<32x32xf32, #tpu.memory_space<vmem>>, %arg5: memref<1x32xf32, #tpu.memory_space<vmem>>, %arg6: memref<32x32xf32, #tpu.memory_space<vmem>>, %arg7: memref<1x32xf32, #tpu.memory_space<vmem>>, %arg8: memref<32x128xf32, #tpu.memory_space<vmem>>, %arg9: memref<1x128xf32, #tpu.memory_space<vmem>>, %arg10: memref<8x128xf32, #tpu.memory_space<vmem>>) attributes {dimension_semantics = [#tpu.dimension_semantics<parallel>], iteration_bounds = array<i64: 1>, scalar_prefetch = 0 : i64, scratch_operands = 0 : i64, tpu.core_type = #tpu.core_type<tc>, window_params = [{transform_indices = @transform_0, window_bounds = array<i64: 8, 16>}, {pipeline_mode = #tpu.pipeline_mode<synchronous>, transform_indices = @transform_1, window_bounds = array<i64: 16, 32>}, {pipeline_mode = #tpu.pipeline_mode<synchronous>, transform_indices = @transform_2, window_bounds = array<i64: 1, 32>}, {pipeline_mode = #tpu.pipeline_mode<synchronous>, transform_indices = @transform_3, window_bounds = array<i64: 32, 32>}, {pipeline_mode = #tpu.pipeline_mode<synchronous>, transform_indices = @transform_4, window_bounds = array<i64: 1, 32>}, {pipeline_mode = #tpu.pipeline_mode<synchronous>, transform_indices = @transform_5, window_bounds = array<i64: 32, 32>}, {pipeline_mode = #tpu.pipeline_mode<synchronous>, transform_indices = @transform_6, window_bounds = array<i64: 1, 32>}, {pipeline_mode = #tpu.pipeline_mode<synchronous>, transform_indices = @transform_7, window_bounds = array<i64: 32, 128>}, {pipeline_mode = #tpu.pipeline_mode<synchronous>, transform_indices = @transform_8, window_bounds = array<i64: 1, 128>}, {transform_indices = @transform_9, window_bounds = array<i64: 8, 128>}]} {
    %c0 = arith.constant 0 : index
    %c0_0 = arith.constant 0 : index
    %0 = vector.load %arg1[%c0, %c0_0] : memref<8x16xf32, #tpu.memory_space<vmem>>, vector<8x16xf32>
    %c0_1 = arith.constant 0 : index
    %c0_2 = arith.constant 0 : index
    %1 = vector.load %arg2[%c0_1, %c0_2] : memref<16x32xf32, #tpu.memory_space<vmem>>, vector<16x32xf32>
    %c0_3 = arith.constant 0 : index
    %c0_4 = arith.constant 0 : index
    %2 = vector.load %arg3[%c0_3, %c0_4] : memref<1x32xf32, #tpu.memory_space<vmem>>, vector<1x32xf32>
    %cst = arith.constant dense<0.000000e+00> : vector<8x32xf32>
    %3 = tpu.matmul %0, %1, %cst {dimension_numbers = #tpu.dot_dimension_numbers<[1], [0], [0], [1], [0, 0, 1, 1], [], []>} : vector<8x16xf32>, vector<16x32xf32>, vector<8x32xf32> -> vector<8x32xf32>
    %4 = vector.broadcast %2 : vector<1x32xf32> to vector<8x32xf32>
    %5 = arith.addf %3, %4 : vector<8x32xf32>
    %cst_5 = arith.constant 0.000000e+00 : f32
    %6 = vector.broadcast %cst_5 : f32 to vector<8x32xf32>
    %7 = arith.maximumf %5, %6 : vector<8x32xf32>
    %c0_6 = arith.constant 0 : index
    %c0_7 = arith.constant 0 : index
    %8 = vector.load %arg4[%c0_6, %c0_7] : memref<32x32xf32, #tpu.memory_space<vmem>>, vector<32x32xf32>
    %c0_8 = arith.constant 0 : index
    %c0_9 = arith.constant 0 : index
    %9 = vector.load %arg5[%c0_8, %c0_9] : memref<1x32xf32, #tpu.memory_space<vmem>>, vector<1x32xf32>
    %cst_10 = arith.constant dense<0.000000e+00> : vector<8x32xf32>
    %10 = tpu.matmul %7, %8, %cst_10 {dimension_numbers = #tpu.dot_dimension_numbers<[1], [0], [0], [1], [0, 0, 1, 1], [], []>} : vector<8x32xf32>, vector<32x32xf32>, vector<8x32xf32> -> vector<8x32xf32>
    %11 = vector.broadcast %9 : vector<1x32xf32> to vector<8x32xf32>
    %12 = arith.addf %10, %11 : vector<8x32xf32>
    %cst_11 = arith.constant 0.000000e+00 : f32
    %13 = vector.broadcast %cst_11 : f32 to vector<8x32xf32>
    %14 = arith.maximumf %12, %13 : vector<8x32xf32>
    %c0_12 = arith.constant 0 : index
    %c0_13 = arith.constant 0 : index
    %15 = vector.load %arg6[%c0_12, %c0_13] : memref<32x32xf32, #tpu.memory_space<vmem>>, vector<32x32xf32>
    %c0_14 = arith.constant 0 : index
    %c0_15 = arith.constant 0 : index
    %16 = vector.load %arg7[%c0_14, %c0_15] : memref<1x32xf32, #tpu.memory_space<vmem>>, vector<1x32xf32>
    %cst_16 = arith.constant dense<0.000000e+00> : vector<8x32xf32>
    %17 = tpu.matmul %14, %15, %cst_16 {dimension_numbers = #tpu.dot_dimension_numbers<[1], [0], [0], [1], [0, 0, 1, 1], [], []>} : vector<8x32xf32>, vector<32x32xf32>, vector<8x32xf32> -> vector<8x32xf32>
    %18 = vector.broadcast %16 : vector<1x32xf32> to vector<8x32xf32>
    %19 = arith.addf %17, %18 : vector<8x32xf32>
    %cst_17 = arith.constant 0.000000e+00 : f32
    %20 = vector.broadcast %cst_17 : f32 to vector<8x32xf32>
    %21 = arith.maximumf %19, %20 : vector<8x32xf32>
    %c0_18 = arith.constant 0 : index
    %c0_19 = arith.constant 0 : index
    %22 = vector.load %arg8[%c0_18, %c0_19] : memref<32x128xf32, #tpu.memory_space<vmem>>, vector<32x128xf32>
    %c0_20 = arith.constant 0 : index
    %c0_21 = arith.constant 0 : index
    %23 = vector.load %arg9[%c0_20, %c0_21] : memref<1x128xf32, #tpu.memory_space<vmem>>, vector<1x128xf32>
    %cst_22 = arith.constant dense<0.000000e+00> : vector<8x128xf32>
    %24 = tpu.matmul %21, %22, %cst_22 {dimension_numbers = #tpu.dot_dimension_numbers<[1], [0], [0], [1], [0, 0, 1, 1], [], []>} : vector<8x32xf32>, vector<32x128xf32>, vector<8x128xf32> -> vector<8x128xf32>
    %25 = vector.broadcast %23 : vector<1x128xf32> to vector<8x128xf32>
    %26 = arith.addf %24, %25 : vector<8x128xf32>
    %27 = tpu.iota {dimensions = array<i32: 1>} : vector<8x128xi32>
    %c1_i32 = arith.constant 1 : i32
    %28 = vector.broadcast %c1_i32 : i32 to vector<8x128xi32>
    %29 = arith.cmpi sge, %27, %28 : vector<8x128xi32>
    %c8_i32 = arith.constant 8 : i32
    %30 = vector.broadcast %c8_i32 : i32 to vector<8x128xi32>
    %31 = arith.cmpi sle, %27, %30 : vector<8x128xi32>
    %32 = arith.andi %29, %31 : vector<8x128xi1>
    %cst_23 = arith.constant 0xFF800000 : f32
    %33 = vector.broadcast %cst_23 : f32 to vector<8x128xf32>
    %34 = arith.select %32, %26, %33 : vector<8x128xi1>, vector<8x128xf32>
    %cst_24 = arith.constant dense<0xFF800000> : vector<8xf32>
    %35 = vector.multi_reduction <maximumf>, %34, %cst_24 [1] : vector<8x128xf32> to vector<8xf32>
    %36 = vector.shape_cast %35 : vector<8xf32> to vector<8x1xf32>
    %37 = vector.broadcast %36 : vector<8x1xf32> to vector<8x128xf32>
    %38 = arith.subf %26, %37 : vector<8x128xf32>
    %39 = math.exp %38 : vector<8x128xf32>
    %cst_25 = arith.constant 0.000000e+00 : f32
    %40 = vector.broadcast %cst_25 : f32 to vector<8x128xf32>
    %41 = arith.select %32, %39, %40 : vector<8x128xi1>, vector<8x128xf32>
    %cst_26 = arith.constant dense<0.000000e+00> : vector<8xf32>
    %42 = vector.multi_reduction <add>, %41, %cst_26 [1] : vector<8x128xf32> to vector<8xf32>
    %43 = vector.shape_cast %42 : vector<8xf32> to vector<8x1xf32>
    %44 = tpu.reciprocal %43 {approx = true} : vector<8x1xf32> -> vector<8x1xf32>
    %45 = arith.mulf %43, %44 : vector<8x1xf32>
    %cst_27 = arith.constant 2.000000e+00 : f32
    %46 = vector.broadcast %cst_27 : f32 to vector<8x1xf32>
    %47 = arith.subf %46, %45 : vector<8x1xf32>
    %48 = arith.mulf %44, %47 : vector<8x1xf32>
    %c0_i32 = arith.constant 0 : i32
    %49 = vector.broadcast %c0_i32 : i32 to vector<8x128xi32>
    %50 = arith.cmpi eq, %27, %49 : vector<8x128xi32>
    %51 = vector.broadcast %48 : vector<8x1xf32> to vector<8x128xf32>
    %52 = arith.mulf %41, %51 : vector<8x128xf32>
    %53 = arith.select %50, %26, %52 : vector<8x128xi1>, vector<8x128xf32>
    %c0_28 = arith.constant 0 : index
    %c0_29 = arith.constant 0 : index
    %54 = vector.load %arg10[%c0_28, %c0_29] : memref<8x128xf32, #tpu.memory_space<vmem>>, vector<8x128xf32>
    tpu.vector_store %arg10[%c0_28, %c0_29], %53 {strides = array<i32>} : memref<8x128xf32, #tpu.memory_space<vmem>>, vector<8x128xf32>,
    return
  }
  func.func @transform_0(%arg0: i32) -> (i32, i32) {
    %c0_i32 = arith.constant 0 : i32
    %c0_i32_0 = arith.constant 0 : i32
    return %arg0, %c0_i32 : i32, i32
  }
  func.func @transform_1(%arg0: i32) -> (i32, i32) {
    %c0_i32 = arith.constant 0 : i32
    %c0_i32_0 = arith.constant 0 : i32
    %c0_i32_1 = arith.constant 0 : i32
    return %c0_i32, %c0_i32_0 : i32, i32
  }
  func.func @transform_2(%arg0: i32) -> (i32, i32) {
    %c0_i32 = arith.constant 0 : i32
    %c0_i32_0 = arith.constant 0 : i32
    %c0_i32_1 = arith.constant 0 : i32
    return %c0_i32, %c0_i32_0 : i32, i32
  }
  func.func @transform_3(%arg0: i32) -> (i32, i32) {
    %c0_i32 = arith.constant 0 : i32
    %c0_i32_0 = arith.constant 0 : i32
    %c0_i32_1 = arith.constant 0 : i32
    return %c0_i32, %c0_i32_0 : i32, i32
  }
  func.func @transform_4(%arg0: i32) -> (i32, i32) {
    %c0_i32 = arith.constant 0 : i32
    %c0_i32_0 = arith.constant 0 : i32
    %c0_i32_1 = arith.constant 0 : i32
    return %c0_i32, %c0_i32_0 : i32, i32
  }
  func.func @transform_5(%arg0: i32) -> (i32, i32) {
    %c0_i32 = arith.constant 0 : i32
    %c0_i32_0 = arith.constant 0 : i32
    %c0_i32_1 = arith.constant 0 : i32
    return %c0_i32, %c0_i32_0 : i32, i32
  }
  func.func @transform_6(%arg0: i32) -> (i32, i32) {
    %c0_i32 = arith.constant 0 : i32
    %c0_i32_0 = arith.constant 0 : i32
    %c0_i32_1 = arith.constant 0 : i32
    return %c0_i32, %c0_i32_0 : i32, i32
  }
  func.func @transform_7(%arg0: i32) -> (i32, i32) {
    %c0_i32 = arith.constant 0 : i32
    %c0_i32_0 = arith.constant 0 : i32
    %c0_i32_1 = arith.constant 0 : i32
    return %c0_i32, %c0_i32_0 : i32, i32
  }
  func.func @transform_8(%arg0: i32) -> (i32, i32) {
    %c0_i32 = arith.constant 0 : i32
    %c0_i32_0 = arith.constant 0 : i32
    %c0_i32_1 = arith.constant 0 : i32
    return %c0_i32, %c0_i32_0 : i32, i32
  }
  func.func @transform_9(%arg0: i32) -> (i32, i32) {
    %c0_i32 = arith.constant 0 : i32
    %c0_i32_0 = arith.constant 0 : i32
    return %arg0, %c0_i32 : i32, i32
  }
}

</mosaic_0001>

<llo_original>
// kernel: mlp_network_forward.1
$region0: #{mlp_network_forward.1}
  #allocation0 [shape = 'u32[]', space=smem, size = 0x4, offset = 0x4, fixed_abs, tag = 'smem constant byte address 0x4 - core index']
  #allocation1 [shape = 'u32[144,128]{1,0:T(1,128)}', space=vmem, size = 0x12000, scoped, tag = 'internal scratch']
  %s0 = inlined_call_operand.vmem [shape: f32[8,16], index: 0, kind: input, shape index: {}]
  %s1 = inlined_call_operand.hbm [shape: f32[16,32], index: 1, kind: input, shape index: {}]
  %s2 = inlined_call_operand.hbm [shape: f32[1,32], index: 2, kind: input, shape index: {}]
  %s3 = inlined_call_operand.vmem [shape: f32[32,32], index: 3, kind: input, shape index: {}]
  %s4 = inlined_call_operand.vmem [shape: f32[1,32], index: 4, kind: input, shape index: {}]
  %s5 = inlined_call_operand.hbm [shape: f32[32,32], index: 5, kind: input, shape index: {}]
  %s6 = inlined_call_operand.vmem [shape: f32[1,32], index: 6, kind: input, shape index: {}]
  %s7 = inlined_call_operand.hbm [shape: f32[32,128], index: 7, kind: input, shape index: {}]
  %s8 = inlined_call_operand.vmem [shape: f32[1,128], index: 8, kind: input, shape index: {}]
  %s9 = inlined_call_operand.vmem [shape: f32[8,128], index: 9, kind: output, shape index: {}]
  %s10 = sld [smem:[#allocation0]]
  $region62: #{mlp_network_forward.1} parent=0
    _
  %s12 = ssub.s32 1, %s10
  %s13 = scalar_select 0, %s12, %s10
  $region1: #{mlp_network_forward.1} parent=0
    #allocation2 [shape = 'u8[8192]{0}', space=vmem, size = 0x2000, scoped, tag = 'input window, operand 1, single buffered']
    #allocation3 [shape = 's32[1]{0}', space=sflag, size = 0x4, scoped, tag = 'scoped memory for mlp_network_forward.1']
    #allocation4 [shape = 'u8[512]{0}', space=vmem, size = 0x400, scoped, tag = 'input window, operand 2, single buffered']
    #allocation5 [shape = 's32[1]{0}', space=sflag, size = 0x4, scoped, tag = 'scoped memory for mlp_network_forward.1']
    #allocation6 [shape = 'u8[16384]{0}', space=vmem, size = 0x4000, scoped, tag = 'input window, operand 5, single buffered']
    #allocation7 [shape = 'u8[16384]{0}', space=vmem, size = 0x4000, scoped, tag = 'input window, operand 7, single buffered']
    #allocation8 [shape = 's32[1]{0}', space=sflag, size = 0x4, scoped, tag = 'scoped memory for mlp_network_forward.1']
    %14 = vsyncpa [#allocation3], 0
    %15 = vsyncpa [#allocation5], 0
    %16 = vsyncpa [#allocation8], 0
    // Predicated region
    $region2: #{mlp_network_forward.1} parent=1 // pred_check
      _
    $region3: #{mlp_network_forward.1} parent=1 // pred_check_branch
      %18 = sbr.rel (0) target = $region5
    $region4: #{mlp_network_forward.1} parent=1 // pred_region
      _
    $region5: #{mlp_network_forward.1} parent=1 // pred_fallthru
      _
    // Predicated region
    $region6: #{mlp_network_forward.1} parent=1 // pred_check
      _
    $region7: #{mlp_network_forward.1} parent=1 // pred_check_branch
      %20 = sbr.rel (0) target = $region9
    $region8: #{mlp_network_forward.1} parent=1 // pred_region
      %s22 = ssub.s32 256, 256
      %23 = vsyncadd [#allocation3], %s22
      %s24 = sshll.u32 [#allocation2], 4
      %s25 = int_to_ptr.vmem [resolvable:$true] %s24
      %30 = dma.hbm_to_vmem [thread:$0]  %s1, 256, %s25, [#allocation3], 128, 128, 8
    $region9: #{mlp_network_forward.1} parent=1 // pred_fallthru
      _
    // Predicated region
    $region10: #{mlp_network_forward.1} parent=1 // pred_check
      _
    $region11: #{mlp_network_forward.1} parent=1 // pred_check_branch
      %32 = sbr.rel (0) target = $region13
    $region12: #{mlp_network_forward.1} parent=1 // pred_region
      %s34 = ssub.s32 16, 16
      %35 = vsyncadd [#allocation5], %s34
      %s37 = sshll.u32 [#allocation4], 4
      %s38 = int_to_ptr.vmem [resolvable:$true] %s37
      %40 = dma.hbm_to_vmem [thread:$0]  %s2, 16, %s38, [#allocation5]
    $region13: #{mlp_network_forward.1} parent=1 // pred_fallthru
      _
    // Predicated region
    $region14: #{mlp_network_forward.1} parent=1 // pred_check
      _
    $region15: #{mlp_network_forward.1} parent=1 // pred_check_branch
      %42 = sbr.rel (0) target = $region17
    $region16: #{mlp_network_forward.1} parent=1 // pred_region
      _
    $region17: #{mlp_network_forward.1} parent=1 // pred_fallthru
      _
    // Predicated region
    $region18: #{mlp_network_forward.1} parent=1 // pred_check
      _
    $region19: #{mlp_network_forward.1} parent=1 // pred_check_branch
      %44 = sbr.rel (0) target = $region21
    $region20: #{mlp_network_forward.1} parent=1 // pred_region
      _
    $region21: #{mlp_network_forward.1} parent=1 // pred_fallthru
      _
    // Predicated region
    $region22: #{mlp_network_forward.1} parent=1 // pred_check
      _
    $region23: #{mlp_network_forward.1} parent=1 // pred_check_branch
      %46 = sbr.rel (0) target = $region25
    $region24: #{mlp_network_forward.1} parent=1 // pred_region
      %s48 = ssub.s32 512, 512
      %49 = vsyncadd [#allocation5], %s48
      %s50 = sshll.u32 [#allocation6], 4
      %s51 = int_to_ptr.vmem [resolvable:$true] %s50
      %56 = dma.hbm_to_vmem [thread:$0]  %s5, 512, %s51, [#allocation5], 128, 128, 8
    $region25: #{mlp_network_forward.1} parent=1 // pred_fallthru
      _
    // Predicated region
    $region26: #{mlp_network_forward.1} parent=1 // pred_check
      _
    $region27: #{mlp_network_forward.1} parent=1 // pred_check_branch
      %58 = sbr.rel (0) target = $region29
    $region28: #{mlp_network_forward.1} parent=1 // pred_region
      _
    $region29: #{mlp_network_forward.1} parent=1 // pred_fallthru
      _
    // Predicated region
    $region30: #{mlp_network_forward.1} parent=1 // pred_check
      _
    $region31: #{mlp_network_forward.1} parent=1 // pred_check_branch
      %60 = sbr.rel (0) target = $region33
    $region32: #{mlp_network_forward.1} parent=1 // pred_region
      %s62 = ssub.s32 512, 512
      %63 = vsyncadd [#allocation8], %s62
      %s64 = sshll.u32 [#allocation7], 4
      %s65 = int_to_ptr.vmem [resolvable:$true] %s64
      %70 = dma.hbm_to_vmem [thread:$0]  %s7, 512, %s65, [#allocation8], 128, 128, 8
    $region33: #{mlp_network_forward.1} parent=1 // pred_fallthru
      _
    // Predicated region
    $region34: #{mlp_network_forward.1} parent=1 // pred_check
      _
    $region35: #{mlp_network_forward.1} parent=1 // pred_check_branch
      %72 = sbr.rel (0) target = $region37
    $region36: #{mlp_network_forward.1} parent=1 // pred_region
      _
    $region37: #{mlp_network_forward.1} parent=1 // pred_fallthru
      _
    // Predicated region
    $region38: #{mlp_network_forward.1} parent=1 // pred_check
      _
    $region39: #{mlp_network_forward.1} parent=1 // pred_check_branch
      %74 = sbr.rel (0) target = $region41
    $region40: #{mlp_network_forward.1} parent=1 // pred_region
      %75 = dma.done [#allocation3], 256
    $region41: #{mlp_network_forward.1} parent=1 // pred_fallthru
      _
    // Predicated region
    $region42: #{mlp_network_forward.1} parent=1 // pred_check
      _
    $region43: #{mlp_network_forward.1} parent=1 // pred_check_branch
      %77 = sbr.rel (0) target = $region45
    $region44: #{mlp_network_forward.1} parent=1 // pred_region
      %78 = dma.done [#allocation5], 16
    $region45: #{mlp_network_forward.1} parent=1 // pred_fallthru
      _
    // Predicated region
    $region46: #{mlp_network_forward.1} parent=1 // pred_check
      _
    $region47: #{mlp_network_forward.1} parent=1 // pred_check_branch
      %80 = sbr.rel (0) target = $region49
    $region48: #{mlp_network_forward.1} parent=1 // pred_region
      %81 = dma.done [#allocation5], 512
    $region49: #{mlp_network_forward.1} parent=1 // pred_fallthru
      _
    // Predicated region
    $region50: #{mlp_network_forward.1} parent=1 // pred_check
      _
    $region51: #{mlp_network_forward.1} parent=1 // pred_check_branch
      %83 = sbr.rel (0) target = $region53
    $region52: #{mlp_network_forward.1} parent=1 // pred_region
      %84 = dma.done [#allocation8], 512
    $region53: #{mlp_network_forward.1} parent=1 // pred_fallthru
      _
    %v85 = vld [vmem:[%s0] sm:$0xff]
    %v86 = vld [vmem:[#allocation2] sm:$0xff]
    %v87 = vld [vmem:[#allocation2 + $0x8] sm:$0xff]
    %v88 = vld [vmem:[#allocation4] sm:$0x1]
    %v90 = vlaneseq
    %v91 = vshrl.u32 %v90, 7
    %v92 = vsub.s32 0, %v91
    %v93 = vrot.slane %v88, %v92
    %vm95 = vcmask 130048
    %v97 = vsel %vm95, %v85, 0
    %99 = vmatprep.subr.mxu0 0.0
    %100 = vmatpush1.msra.mxu0 %v86
    %101 = vmatprep.subr.mxu0 0.0
    %102 = vmatpush1.msra.mxu0 %v87
    %103 = vmatprep.subr.mxu0 0.0
    %104 = vmatpush1.msra.mxu0 0.0
    %105 = vmatprep.subr.mxu0 0.0
    %106 = vmatpush1.msra.mxu0 0.0
    %107 = vmatprep.subr.mxu0 0.0
    %108 = vmatpush1.msra.mxu0 0.0
    %109 = vmatprep.subr.mxu0 0.0
    %110 = vmatpush1.msra.mxu0 0.0
    %111 = vmatprep.subr.mxu0 0.0
    %112 = vmatpush1.msra.mxu0 0.0
    %113 = vmatprep.subr.mxu0 0.0
    %114 = vmatpush1.msra.mxu0 0.0
    %115 = vmatprep.subr.mxu0 0.0
    %116 = vmatpush1.msra.mxu0 0.0
    %117 = vmatprep.subr.mxu0 0.0
    %118 = vmatpush1.msra.mxu0 0.0
    %119 = vmatprep.subr.mxu0 0.0
    %120 = vmatpush1.msra.mxu0 0.0
    %121 = vmatprep.subr.mxu0 0.0
    %122 = vmatpush1.msra.mxu0 0.0
    %123 = vmatprep.subr.mxu0 0.0
    %124 = vmatpush1.msra.mxu0 0.0
    %125 = vmatprep.subr.mxu0 0.0
    %126 = vmatpush1.msra.mxu0 0.0
    %127 = vmatprep.subr.mxu0 0.0
    %128 = vmatpush1.msra.mxu0 0.0
    %129 = vmatprep.subr.mxu0 0.0
    %130 = vmatpush1.msra.mxu0 0.0
    %131 = vmatprep.subr.mxu0 0.0
    %132 = vmatpush1.msra.mxu0 0.0
    %133 = vmatprep.subr.mxu0 0.0
    %134 = vmatpush1.msra.mxu0 0.0
    %135 = vmatprep.subr.mxu0 0.0
    %136 = vmatpush1.msra.mxu0 0.0
    %137 = vmatprep.subr.mxu0 0.0
    %138 = vmatpush1.msra.mxu0 0.0
    %139 = vmatprep.subr.mxu0 0.0
    %140 = vmatpush1.msra.mxu0 0.0
    %141 = vmatprep.subr.mxu0 0.0
    %142 = vmatpush1.msra.mxu0 0.0
    %143 = vmatprep.subr.mxu0 0.0
    %144 = vmatpush1.msra.mxu0 0.0
    %145 = vmatprep.subr.mxu0 0.0
    %146 = vmatpush1.msra.mxu0 0.0
    %147 = vmatprep.subr.mxu0 0.0
    %148 = vmatpush1.msra.mxu0 0.0
    %149 = vmatprep.subr.mxu0 0.0
    %150 = vmatpush1.msra.mxu0 0.0
    %151 = vmatprep.subr.mxu0 0.0
    %152 = vmatpush1.msra.mxu0 0.0
    %153 = vmatprep.subr.mxu0 0.0
    %154 = vmatpush1.msra.mxu0 0.0
    %155 = vmatprep.subr.mxu0 0.0
    %156 = vmatpush1.msra.mxu0 0.0
    %157 = vmatprep.subr.mxu0 0.0
    %158 = vmatpush1.msra.mxu0 0.0
    %159 = vmatprep.subr.mxu0 0.0
    %160 = vmatpush1.msra.mxu0 0.0
    %161 = vmatprep.subr.mxu0 0.0
    %162 = vmatpush1.msra.mxu0 0.0
    %163 = vmatprep.mubr.f32.mxu0 0.0
    %164 = vmatmul.mubr.f32.gmra.mrb[0].mxu0 %v97
    %v165 = vpop.f32.mrb[0].mxu0
    %v166 = vadd.f32 %v93, %v165
    %v167 = vpop.f32.mrb[0].mxu0
    %168 = vdwg.mxu0
    %v169 = vmax.f32 %v166, 0.0
    %v170 = vld [vmem:[%s3] sm:$0xff]
    %v171 = vld [vmem:[%s3 + $0x8] sm:$0xff]
    %v172 = vld [vmem:[%s3 + $0x10] sm:$0xff]
    %v173 = vld [vmem:[%s3 + $0x18] sm:$0xff]
    %v174 = vld [vmem:[%s4] sm:$0x1]
    %v176 = vlaneseq
    %v177 = vshrl.u32 %v176, 7
    %v178 = vsub.s32 0, %v177
    %v179 = vrot.slane %v174, %v178
    %vm181 = vcmask 261120
    %v183 = vsel %vm181, %v169, 0
    %185 = vmatprep.subr.mxu0 0.0
    %186 = vmatpush1.msra.mxu0 %v170
    %187 = vmatprep.subr.mxu0 0.0
    %188 = vmatpush1.msra.mxu0 %v171
    %189 = vmatprep.subr.mxu0 0.0
    %190 = vmatpush1.msra.mxu0 %v172
    %191 = vmatprep.subr.mxu0 0.0
    %192 = vmatpush1.msra.mxu0 %v173
    %193 = vmatprep.subr.mxu0 0.0
    %194 = vmatpush1.msra.mxu0 0.0
    %195 = vmatprep.subr.mxu0 0.0
    %196 = vmatpush1.msra.mxu0 0.0
    %197 = vmatprep.subr.mxu0 0.0
    %198 = vmatpush1.msra.mxu0 0.0
    %199 = vmatprep.subr.mxu0 0.0
    %200 = vmatpush1.msra.mxu0 0.0
    %201 = vmatprep.subr.mxu0 0.0
    %202 = vmatpush1.msra.mxu0 0.0
    %203 = vmatprep.subr.mxu0 0.0
    %204 = vmatpush1.msra.mxu0 0.0
    %205 = vmatprep.subr.mxu0 0.0
    %206 = vmatpush1.msra.mxu0 0.0
    %207 = vmatprep.subr.mxu0 0.0
    %208 = vmatpush1.msra.mxu0 0.0
    %209 = vmatprep.subr.mxu0 0.0
    %210 = vmatpush1.msra.mxu0 0.0
    %211 = vmatprep.subr.mxu0 0.0
    %212 = vmatpush1.msra.mxu0 0.0
    %213 = vmatprep.subr.mxu0 0.0
    %214 = vmatpush1.msra.mxu0 0.0
    %215 = vmatprep.subr.mxu0 0.0
    %216 = vmatpush1.msra.mxu0 0.0
    %217 = vmatprep.subr.mxu0 0.0
    %218 = vmatpush1.msra.mxu0 0.0
    %219 = vmatprep.subr.mxu0 0.0
    %220 = vmatpush1.msra.mxu0 0.0
    %221 = vmatprep.subr.mxu0 0.0
    %222 = vmatpush1.msra.mxu0 0.0
    %223 = vmatprep.subr.mxu0 0.0
    %224 = vmatpush1.msra.mxu0 0.0
    %225 = vmatprep.subr.mxu0 0.0
    %226 = vmatpush1.msra.mxu0 0.0
    %227 = vmatprep.subr.mxu0 0.0
    %228 = vmatpush1.msra.mxu0 0.0
    %229 = vmatprep.subr.mxu0 0.0
    %230 = vmatpush1.msra.mxu0 0.0
    %231 = vmatprep.subr.mxu0 0.0
    %232 = vmatpush1.msra.mxu0 0.0
    %233 = vmatprep.subr.mxu0 0.0
    %234 = vmatpush1.msra.mxu0 0.0
    %235 = vmatprep.subr.mxu0 0.0
    %236 = vmatpush1.msra.mxu0 0.0
    %237 = vmatprep.subr.mxu0 0.0
    %238 = vmatpush1.msra.mxu0 0.0
    %239 = vmatprep.subr.mxu0 0.0
    %240 = vmatpush1.msra.mxu0 0.0
    %241 = vmatprep.subr.mxu0 0.0
    %242 = vmatpush1.msra.mxu0 0.0
    %243 = vmatprep.subr.mxu0 0.0
    %244 = vmatpush1.msra.mxu0 0.0
    %245 = vmatprep.subr.mxu0 0.0
    %246 = vmatpush1.msra.mxu0 0.0
    %247 = vmatprep.subr.mxu0 0.0
    %248 = vmatpush1.msra.mxu0 0.0
    %249 = vmatprep.mubr.f32.mxu0 0.0
    %250 = vmatmul.mubr.f32.gmra.mrb[0].mxu0 %v183
    %v251 = vpop.f32.mrb[0].mxu0
    %v252 = vadd.f32 %v179, %v251
    %v253 = vpop.f32.mrb[0].mxu0
    %254 = vdwg.mxu0
    %v255 = vmax.f32 %v252, 0.0
    %v256 = vld [vmem:[#allocation6] sm:$0xff]
    %v257 = vld [vmem:[#allocation6 + $0x8] sm:$0xff]
    %v258 = vld [vmem:[#allocation6 + $0x10] sm:$0xff]
    %v259 = vld [vmem:[#allocation6 + $0x18] sm:$0xff]
    %v260 = vld [vmem:[%s6] sm:$0x1]
    %v262 = vlaneseq
    %v263 = vshrl.u32 %v262, 7
    %v264 = vsub.s32 0, %v263
    %v265 = vrot.slane %v260, %v264
    %v268 = vsel %vm181, %v255, 0
    %270 = vmatprep.subr.mxu0 0.0
    %271 = vmatpush1.msra.mxu0 %v256
    %272 = vmatprep.subr.mxu0 0.0
    %273 = vmatpush1.msra.mxu0 %v257
    %274 = vmatprep.subr.mxu0 0.0
    %275 = vmatpush1.msra.mxu0 %v258
    %276 = vmatprep.subr.mxu0 0.0
    %277 = vmatpush1.msra.mxu0 %v259
    %278 = vmatprep.subr.mxu0 0.0
    %279 = vmatpush1.msra.mxu0 0.0
    %280 = vmatprep.subr.mxu0 0.0
    %281 = vmatpush1.msra.mxu0 0.0
    %282 = vmatprep.subr.mxu0 0.0
    %283 = vmatpush1.msra.mxu0 0.0
    %284 = vmatprep.subr.mxu0 0.0
    %285 = vmatpush1.msra.mxu0 0.0
    %286 = vmatprep.subr.mxu0 0.0
    %287 = vmatpush1.msra.mxu0 0.0
    %288 = vmatprep.subr.mxu0 0.0
    %289 = vmatpush1.msra.mxu0 0.0
    %290 = vmatprep.subr.mxu0 0.0
    %291 = vmatpush1.msra.mxu0 0.0
    %292 = vmatprep.subr.mxu0 0.0
    %293 = vmatpush1.msra.mxu0 0.0
    %294 = vmatprep.subr.mxu0 0.0
    %295 = vmatpush1.msra.mxu0 0.0
    %296 = vmatprep.subr.mxu0 0.0
    %297 = vmatpush1.msra.mxu0 0.0
    %298 = vmatprep.subr.mxu0 0.0
    %299 = vmatpush1.msra.mxu0 0.0
    %300 = vmatprep.subr.mxu0 0.0
    %301 = vmatpush1.msra.mxu0 0.0
    %302 = vmatprep.subr.mxu0 0.0
    %303 = vmatpush1.msra.mxu0 0.0
    %304 = vmatprep.subr.mxu0 0.0
    %305 = vmatpush1.msra.mxu0 0.0
    %306 = vmatprep.subr.mxu0 0.0
    %307 = vmatpush1.msra.mxu0 0.0
    %308 = vmatprep.subr.mxu0 0.0
    %309 = vmatpush1.msra.mxu0 0.0
    %310 = vmatprep.subr.mxu0 0.0
    %311 = vmatpush1.msra.mxu0 0.0
    %312 = vmatprep.subr.mxu0 0.0
    %313 = vmatpush1.msra.mxu0 0.0
    %314 = vmatprep.subr.mxu0 0.0
    %315 = vmatpush1.msra.mxu0 0.0
    %316 = vmatprep.subr.mxu0 0.0
    %317 = vmatpush1.msra.mxu0 0.0
    %318 = vmatprep.subr.mxu0 0.0
    %319 = vmatpush1.msra.mxu0 0.0
    %320 = vmatprep.subr.mxu0 0.0
    %321 = vmatpush1.msra.mxu0 0.0
    %322 = vmatprep.subr.mxu0 0.0
    %323 = vmatpush1.msra.mxu0 0.0
    %324 = vmatprep.subr.mxu0 0.0
    %325 = vmatpush1.msra.mxu0 0.0
    %326 = vmatprep.subr.mxu0 0.0
    %327 = vmatpush1.msra.mxu0 0.0
    %328 = vmatprep.subr.mxu0 0.0
    %329 = vmatpush1.msra.mxu0 0.0
    %330 = vmatprep.subr.mxu0 0.0
    %331 = vmatpush1.msra.mxu0 0.0
    %332 = vmatprep.subr.mxu0 0.0
    %333 = vmatpush1.msra.mxu0 0.0
    %334 = vmatprep.mubr.f32.mxu0 0.0
    %335 = vmatmul.mubr.f32.gmra.mrb[0].mxu0 %v268
    %v336 = vpop.f32.mrb[0].mxu0
    %v337 = vadd.f32 %v265, %v336
    %v338 = vpop.f32.mrb[0].mxu0
    %339 = vdwg.mxu0
    %v340 = vmax.f32 %v337, 0.0
    %v341 = vld [vmem:[#allocation7] sm:$0xff]
    %v342 = vld [vmem:[#allocation7 + $0x8] sm:$0xff]
    %v343 = vld [vmem:[#allocation7 + $0x10] sm:$0xff]
    %v344 = vld [vmem:[#allocation7 + $0x18] sm:$0xff]
    %v345 = vld [vmem:[%s8] sm:$0x1]
    %v347 = vlaneseq
    %v348 = vshrl.u32 %v347, 7
    %v349 = vsub.s32 0, %v348
    %v350 = vrot.slane %v345, %v349
    %v353 = vsel %vm181, %v340, 0
    %355 = vmatprep.subr.mxu0 0.0
    %356 = vmatpush1.msra.mxu0 %v341
    %357 = vmatprep.subr.mxu0 0.0
    %358 = vmatpush1.msra.mxu0 %v342
    %359 = vmatprep.subr.mxu0 0.0
    %360 = vmatpush1.msra.mxu0 %v343
    %361 = vmatprep.subr.mxu0 0.0
    %362 = vmatpush1.msra.mxu0 %v344
    %363 = vmatprep.subr.mxu0 0.0
    %364 = vmatpush1.msra.mxu0 0.0
    %365 = vmatprep.subr.mxu0 0.0
    %366 = vmatpush1.msra.mxu0 0.0
    %367 = vmatprep.subr.mxu0 0.0
    %368 = vmatpush1.msra.mxu0 0.0
    %369 = vmatprep.subr.mxu0 0.0
    %370 = vmatpush1.msra.mxu0 0.0
    %371 = vmatprep.subr.mxu0 0.0
    %372 = vmatpush1.msra.mxu0 0.0
    %373 = vmatprep.subr.mxu0 0.0
    %374 = vmatpush1.msra.mxu0 0.0
    %375 = vmatprep.subr.mxu0 0.0
    %376 = vmatpush1.msra.mxu0 0.0
    %377 = vmatprep.subr.mxu0 0.0
    %378 = vmatpush1.msra.mxu0 0.0
    %379 = vmatprep.subr.mxu0 0.0
    %380 = vmatpush1.msra.mxu0 0.0
    %381 = vmatprep.subr.mxu0 0.0
    %382 = vmatpush1.msra.mxu0 0.0
    %383 = vmatprep.subr.mxu0 0.0
    %384 = vmatpush1.msra.mxu0 0.0
    %385 = vmatprep.subr.mxu0 0.0
    %386 = vmatpush1.msra.mxu0 0.0
    %387 = vmatprep.subr.mxu0 0.0
    %388 = vmatpush1.msra.mxu0 0.0
    %389 = vmatprep.subr.mxu0 0.0
    %390 = vmatpush1.msra.mxu0 0.0
    %391 = vmatprep.subr.mxu0 0.0
    %392 = vmatpush1.msra.mxu0 0.0
    %393 = vmatprep.subr.mxu0 0.0
    %394 = vmatpush1.msra.mxu0 0.0
    %395 = vmatprep.subr.mxu0 0.0
    %396 = vmatpush1.msra.mxu0 0.0
    %397 = vmatprep.subr.mxu0 0.0
    %398 = vmatpush1.msra.mxu0 0.0
    %399 = vmatprep.subr.mxu0 0.0
    %400 = vmatpush1.msra.mxu0 0.0
    %401 = vmatprep.subr.mxu0 0.0
    %402 = vmatpush1.msra.mxu0 0.0
    %403 = vmatprep.subr.mxu0 0.0
    %404 = vmatpush1.msra.mxu0 0.0
    %405 = vmatprep.subr.mxu0 0.0
    %406 = vmatpush1.msra.mxu0 0.0
    %407 = vmatprep.subr.mxu0 0.0
    %408 = vmatpush1.msra.mxu0 0.0
    %409 = vmatprep.subr.mxu0 0.0
    %410 = vmatpush1.msra.mxu0 0.0
    %411 = vmatprep.subr.mxu0 0.0
    %412 = vmatpush1.msra.mxu0 0.0
    %413 = vmatprep.subr.mxu0 0.0
    %414 = vmatpush1.msra.mxu0 0.0
    %415 = vmatprep.subr.mxu0 0.0
    %416 = vmatpush1.msra.mxu0 0.0
    %417 = vmatprep.subr.mxu0 0.0
    %418 = vmatpush1.msra.mxu0 0.0
    %419 = vmatprep.mubr.f32.mxu0 0.0
    %420 = vmatmul.mubr.f32.gmra.mrb[0].mxu0 %v353
    %v421 = vpop.f32.mrb[0].mxu0
    %v422 = vadd.f32 %v350, %v421
    %v423 = vpop.f32.mrb[0].mxu0
    %424 = vdwg.mxu0
    %v425 = vlaneseq
    %v426 = vand.u32 %v425, 127
    %vm427 = vcmp.ge.s32.totalorder %v426, 1
    %vm428 = vcmp.le.s32.totalorder %v426, 8
    %vm429 = vmand %vm427, %vm428
    %v430 = vsel %vm429, %v422, -inf
    %431 = vmax.xlane.f32.xlu0 %v430
    %v432 = vpop.xlane.xlu0 %431
    %v433 = vsub.f32 %v422, %v432
    %v434 = vmul.f32 %v433, 1.442695
    %v435 = vpow.pop %v434
    %v436 = vsel %vm429, %v435, 0.0
    %437 = vadd.xlane.f32.xlu0 %v436
    %v438 = vpop.xlane.xlu0 %437
    %v439 = vrcp.pop %v438
    %v440 = vmul.f32 %v438, %v439
    %v441 = vsub.f32 2.0, %v440
    %v442 = vmul.f32 %v439, %v441
    %vm443 = vcmp.eq.s32.totalorder %v426, 0
    %v444 = vmul.f32 %v436, %v442
    %v445 = vsel %vm443, %v422, %v444
    %446 = vst [vmem:[%s9] sm:$0xff] %v445
    // Predicated region
    $region54: #{mlp_network_forward.1} parent=1 // pred_check
      _
    $region55: #{mlp_network_forward.1} parent=1 // pred_check_branch
      %448 = sbr.rel (0) target = $region57
    $region56: #{mlp_network_forward.1} parent=1 // pred_region
      _
    $region57: #{mlp_network_forward.1} parent=1 // pred_fallthru
      _
    // Predicated region
    $region58: #{mlp_network_forward.1} parent=1 // pred_check
      _
    $region59: #{mlp_network_forward.1} parent=1 // pred_check_branch
      %450 = sbr.rel (0) target = $region61
    $region60: #{mlp_network_forward.1} parent=1 // pred_region
      _
    $region61: #{mlp_network_forward.1} parent=1 // pred_fallthru
      _
    %451 = vsyncpa [#allocation3], 1
    %452 = vsyncpa [#allocation5], 1
    %453 = vsyncpa [#allocation8], 1

</llo_original>
